<compile_context>
chip_gen: v5e
topology: v5e:2x2
jax: 0.10.0
libtpu: 0.0.40
codegen_flags: <defaults>
</compile_context>

<pallas_src>
import numpy as np
import jax
import jax.numpy as jnp
from jax import lax
from jax.experimental import pallas as pl
from jax.experimental.pallas import tpu as pltpu

EPS = 1e-5  # PyTorch BatchNorm2d default eps


def make_preact_block_kernel(N, C, H, W):
    R = N * H
    L = W * C

    def kernel(x_ref, wb_ref, sm_ref, p_ref, o_ref):
        x = x_ref[...]                                        # (R, L) f32

        # vertical-tap validity masks (depend only on h = r % H); computed once
        # and shared by both convs; applied by multiply (VPU), not where.
        h = lax.broadcasted_iota(jnp.int32, (R, 1), 0) % H
        m_up = (h >= 1).astype(jnp.float32)                   # src row h-1 valid
        m_dn = (h <= H - 2).astype(jnp.float32)               # src row h+1 valid

        # row selector for packing the two BN stat rows into one (2, L) LHS.
        row2 = lax.broadcasted_iota(jnp.int32, (2, 1), 0)

        def bn_relu(v, g, b):
            # single-pass batch stats: per-lane sum and sum-of-squares, packed
            # into a (2, L) LHS (row select, no sublane concat), then ONE tiny
            # matmul against the channel-group mean matrix gives per-channel
            # mean and E[x^2] replicated across every lane of that channel.
            s1 = jnp.sum(v, axis=0, keepdims=True)            # (1, L)
            s2 = jnp.sum(v * v, axis=0, keepdims=True)        # (1, L)
            lhs = jnp.where(row2 == 0,
                            jnp.broadcast_to(s1, (2, L)),
                            jnp.broadcast_to(s2, (2, L)))     # (2, L)
            st = jnp.dot(lhs, sm_ref[...],
                         preferred_element_type=jnp.float32)  # (2, L)
            mean = st[0:1, :]
            ex2 = st[1:2, :]
            # clamp: single-pass E[x^2]-mean^2 can go slightly negative.
            var = jnp.maximum(ex2 - mean * mean, 0.0)
            scale = g * lax.rsqrt(var + EPS)
            shift = b - mean * scale
            return jnp.maximum(v * scale + shift, 0.0)

        def conv3x3(v, w_flat):
            # lowered conv: vertical taps via 2 sublane rolls (+ shared row
            # masks), then ONE (R, 3L) @ (3L, L) bf16 MXU matmul with f32
            # accumulation; horizontal taps + W zero-padding live inside the
            # block-banded weights.
            up = pltpu.roll(v, shift=1, axis=0) * m_up        # up[r] = v[r-1]
            dn = pltpu.roll(v, shift=R - 1, axis=0) * m_dn    # dn[r] = v[r+1]
            lhs = jnp.concatenate([up, v, dn], axis=1).astype(jnp.bfloat16)
            return jnp.dot(lhs, w_flat, preferred_element_type=jnp.float32)

        out = bn_relu(x, p_ref[0:1, :], p_ref[1:2, :])        # bn1 + relu
        out = conv3x3(out, wb_ref[0])                         # conv1
        out = bn_relu(out, p_ref[2:3, :], p_ref[3:4, :])      # bn2 + relu
        out = conv3x3(out, wb_ref[1])                         # conv2
        o_ref[...] = out + x                                  # identity shortcut

    return kernel


def preact_block(x_nchw, w1_oihw, w2_oihw, g1, b1, g2, b2):
    """Forward pass of PreActBlock (stride=1, in_planes==planes)."""
    N, C, H, W = x_nchw.shape
    assert w1_oihw.shape == (C, C, 3, 3) and w2_oihw.shape == (C, C, 3, 3)
    R, L = N * H, W * C

    # ---------------- wrapper-side layout plumbing only ----------------
    # activations: NCHW -> (N*H, W*C) lane-dense slab
    x2d = jnp.transpose(x_nchw, (0, 2, 3, 1)).reshape(R, L)

    # conv weights: lower each 3x3 conv into a single (3L, L) block-banded
    # matrix (rows 0:L -> vertical tap "up", L:2L -> center, 2L:3L -> "down").
    # sel[kx, win, wout] = 1 iff win == wout + (kx - 1); zero padding along W
    # is implicit because win stays in [0, W).
    sel = np.zeros((3, W, W), np.float32)
    for kx in range(3):
        dx = kx - 1
        for wout in range(W):
            win = wout + dx
            if 0 <= win < W:
                sel[kx, win, wout] = 1.0
    sel = jnp.asarray(sel)

    def band(w_oihw):
        w_hwio = jnp.transpose(w_oihw, (2, 3, 1, 0)).astype(jnp.float32)  # (3,3,Ci,Co)
        mats = [jnp.einsum('xab,xio->aibo', sel, w_hwio[ky]).reshape(L, L)
                for ky in range(3)]
        return jnp.stack(mats, axis=0).reshape(3 * L, L)                  # (3L, L)

    # both convs stacked, cast to bf16 wrapper-side (free per call, MXU-native).
    wb = jnp.stack([band(w1_oihw), band(w2_oihw)], axis=0).astype(jnp.bfloat16)

    # channel-group mean matrix: (s @ sm)[l'] = mean over (N,H,W) of the
    # channel living in lane l', replicated across every lane of that channel.
    lane_c = np.arange(L) % C
    sm = jnp.asarray(
        (lane_c[:, None] == lane_c[None, :]).astype(np.float32) / float(N * H * W))

    # BN affine params packed into one (4, L) array: rows = [g1, b1, g2, b2],
    # each tiled to the (w, c) lane layout.
    def lane_tile(p):
        return jnp.tile(p.astype(jnp.float32), W)             # (L,)

    params = jnp.stack([lane_tile(g1), lane_tile(b1),
                        lane_tile(g2), lane_tile(b2)], axis=0)  # (4, L)

    kernel = make_preact_block_kernel(N, C, H, W)
    cost = pl.CostEstimate(
        flops=2 * (2 * R * (3 * L) * L) + 2 * (2 * 2 * L * L),   # 2 convs + 2 BN-stat dots
        transcendentals=2 * L,                                   # rsqrt per BN
        bytes_accessed=4 * (2 * R * L + L * L + 4 * L) + 2 * (2 * 3 * L * L))

    out2d = pl.pallas_call(
        kernel,
        out_shape=jax.ShapeDtypeStruct((R, L), jnp.float32),
        in_specs=[pl.BlockSpec(memory_space=pltpu.MemorySpace.VMEM)] * 4,
        out_specs=pl.BlockSpec(memory_space=pltpu.MemorySpace.VMEM),
        cost_estimate=cost,
    )(x2d, wb, sm, params)

    return jnp.transpose(out2d.reshape(N, H, W, C), (0, 3, 1, 2))   # back to NCHW


def reference(x_nchw, w1_oihw, w2_oihw, g1, b1, g2, b2):
    """Pure-JAX reference matching the PyTorch forward (training-mode BN)."""
    def bn_relu(x, g, b):
        mean = jnp.mean(x, axis=(0, 2, 3), keepdims=True)
        var = jnp.mean((x - mean) ** 2, axis=(0, 2, 3), keepdims=True)
        xh = (x - mean) * lax.rsqrt(var + EPS)
        return jnp.maximum(xh * g.reshape(1, -1, 1, 1) + b.reshape(1, -1, 1, 1), 0.0)

    def conv(x, w):
        return lax.conv_general_dilated(
            x, w, window_strides=(1, 1), padding="SAME",
            dimension_numbers=("NCHW", "OIHW", "NCHW"),
            precision=lax.Precision.HIGHEST)

    out = bn_relu(x_nchw, g1, b1)
    h = conv(out, w1_oihw)
    h = bn_relu(h, g2, b2)
    h = conv(h, w2_oihw)
    return h + x_nchw


if __name__ == "__main__":
    # small shapes consistent with the module: in_planes = planes = 8, stride = 1
    N, C, H, W = 2, 8, 16, 16
    key = jax.random.PRNGKey(0)
    k = jax.random.split(key, 7)

    x = jax.random.normal(k[0], (N, C, H, W), jnp.float32)
    w1 = 0.1 * jax.random.normal(k[1], (C, C, 3, 3), jnp.float32)   # conv1 weight (OIHW)
    w2 = 0.1 * jax.random.normal(k[2], (C, C, 3, 3), jnp.float32)   # conv2 weight (OIHW)
    g1 = 1.0 + 0.1 * jax.random.normal(k[3], (C,), jnp.float32)     # bn1 gamma
    b1 = 0.1 * jax.random.normal(k[4], (C,), jnp.float32)           # bn1 beta
    g2 = 1.0 + 0.1 * jax.random.normal(k[5], (C,), jnp.float32)     # bn2 gamma
    b2 = 0.1 * jax.random.normal(k[6], (C,), jnp.float32)           # bn2 beta

    out = preact_block(x, w1, w2, g1, b1, g2, b2)
    out = jax.block_until_ready(out)

    ref = reference(x, w1, w2, g1, b1, g2, b2)
    assert out.shape == (N, C, H, W) and out.dtype == jnp.float32
    assert jnp.allclose(out, ref, atol=1e-2, rtol=1e-2), "mismatch vs reference"

    print("KERNEL_OK")
</pallas_src>

<mosaic_0001>
module attributes {stable_mosaic.version = 11 : i64} {
  func.func @kernel(%arg0: memref<32x128xf32, #tpu.memory_space<vmem>>, %arg1: memref<2x384x128xbf16, #tpu.memory_space<vmem>>, %arg2: memref<128x128xf32, #tpu.memory_space<vmem>>, %arg3: memref<4x128xf32, #tpu.memory_space<vmem>>, %arg4: memref<32x128xf32, #tpu.memory_space<vmem>>) attributes {dimension_semantics = [], scalar_prefetch = 0 : i64, scratch_operands = 0 : i64, tpu.core_type = #tpu.core_type<tc>} {
    %c0 = arith.constant 0 : index
    %c0_0 = arith.constant 0 : index
    %0 = vector.load %arg0[%c0, %c0_0] : memref<32x128xf32, #tpu.memory_space<vmem>>, vector<32x128xf32>
    %1 = tpu.iota {dimensions = array<i32: 0>} : vector<32x1xi32>
    %c16_i32 = arith.constant 16 : i32
    %c0_i32 = arith.constant 0 : i32
    %2 = arith.cmpi eq, %c16_i32, %c0_i32 : i32
    %c1_i32 = arith.constant 1 : i32
    %3 = arith.select %2, %c1_i32, %c16_i32 : i32
    %4 = vector.broadcast %3 : i32 to vector<32x1xi32>
    %5 = arith.remsi %1, %4 : vector<32x1xi32>
    %c0_i32_1 = arith.constant 0 : i32
    %6 = vector.broadcast %c0_i32_1 : i32 to vector<32x1xi32>
    %7 = arith.cmpi ne, %5, %6 : vector<32x1xi32>
    %c0_i32_2 = arith.constant 0 : i32
    %8 = vector.broadcast %c0_i32_2 : i32 to vector<32x1xi32>
    %9 = arith.cmpi slt, %5, %8 : vector<32x1xi32>
    %c0_i32_3 = arith.constant 0 : i32
    %10 = arith.cmpi slt, %3, %c0_i32_3 : i32
    %11 = vector.broadcast %10 : i1 to vector<32x1xi1>
    %12 = vector.broadcast %11 : vector<32x1xi1> to vector<32x1xi1>
    %13 = arith.xori %9, %12 : vector<32x1xi1>
    %14 = arith.andi %13, %7 : vector<32x1xi1>
    %15 = vector.broadcast %3 : i32 to vector<32x1xi32>
    %16 = arith.addi %5, %15 : vector<32x1xi32>
    %17 = arith.select %14, %16, %5 : vector<32x1xi1>, vector<32x1xi32>
    %c1_i32_4 = arith.constant 1 : i32
    %18 = vector.broadcast %c1_i32_4 : i32 to vector<32x1xi32>
    %19 = arith.cmpi sge, %17, %18 : vector<32x1xi32>
    %20 = arith.extui %19 : vector<32x1xi1> to vector<32x1xi32>
    %21 = arith.sitofp %20 : vector<32x1xi32> to vector<32x1xf32>
    %c14_i32 = arith.constant 14 : i32
    %22 = vector.broadcast %c14_i32 : i32 to vector<32x1xi32>
    %23 = arith.cmpi sle, %17, %22 : vector<32x1xi32>
    %24 = arith.extui %23 : vector<32x1xi1> to vector<32x1xi32>
    %25 = arith.sitofp %24 : vector<32x1xi32> to vector<32x1xf32>
    %26 = tpu.iota {dimensions = array<i32: 0>} : vector<2x1xi32>
    %c0_5 = arith.constant 0 : index
    %c0_6 = arith.constant 0 : index
    %27 = vector.load %arg3[%c0_5, %c0_6] : memref<4x128xf32, #tpu.memory_space<vmem>>, vector<1x128xf32>
    %c1 = arith.constant 1 : index
    %c0_7 = arith.constant 0 : index
    %28 = vector.load %arg3[%c1, %c0_7] : memref<4x128xf32, #tpu.memory_space<vmem>>, vector<1x128xf32>
    %cst = arith.constant dense<0.000000e+00> : vector<128xf32>
    %29 = vector.multi_reduction <add>, %0, %cst [0] : vector<32x128xf32> to vector<128xf32>
    %30 = vector.shape_cast %29 : vector<128xf32> to vector<1x128xf32>
    %31 = arith.mulf %0, %0 : vector<32x128xf32>
    %cst_8 = arith.constant dense<0.000000e+00> : vector<128xf32>
    %32 = vector.multi_reduction <add>, %31, %cst_8 [0] : vector<32x128xf32> to vector<128xf32>
    %33 = vector.shape_cast %32 : vector<128xf32> to vector<1x128xf32>
    %c0_i32_9 = arith.constant 0 : i32
    %34 = vector.broadcast %c0_i32_9 : i32 to vector<2x1xi32>
    %35 = arith.cmpi eq, %26, %34 : vector<2x1xi32>
    %36 = vector.shape_cast %30 : vector<1x128xf32> to vector<1x128xf32>
    %37 = vector.broadcast %36 : vector<1x128xf32> to vector<2x128xf32>
    %38 = vector.shape_cast %33 : vector<1x128xf32> to vector<1x128xf32>
    %39 = vector.broadcast %38 : vector<1x128xf32> to vector<2x128xf32>
    %40 = vector.shape_cast %35 : vector<2x1xi1> to vector<2x1xi1>
    %41 = vector.broadcast %40 : vector<2x1xi1> to vector<2x128xi1>
    %42 = arith.select %41, %37, %39 : vector<2x128xi1>, vector<2x128xf32>
    %c0_10 = arith.constant 0 : index
    %c0_11 = arith.constant 0 : index
    %43 = vector.load %arg2[%c0_10, %c0_11] : memref<128x128xf32, #tpu.memory_space<vmem>>, vector<128x128xf32>
    %cst_12 = arith.constant dense<0.000000e+00> : vector<2x128xf32>
    %44 = tpu.matmul %42, %43, %cst_12 {dimension_numbers = #tpu.dot_dimension_numbers<[1], [0], [0], [1], [0, 0, 1, 1], [], []>} : vector<2x128xf32>, vector<128x128xf32>, vector<2x128xf32> -> vector<2x128xf32>
    %45 = vector.extract_strided_slice %44 {offsets = [0, 0], sizes = [1, 128], strides = [1, 1]} : vector<2x128xf32> to vector<1x128xf32>
    %46 = vector.extract_strided_slice %44 {offsets = [1, 0], sizes = [1, 128], strides = [1, 1]} : vector<2x128xf32> to vector<1x128xf32>
    %47 = arith.mulf %45, %45 : vector<1x128xf32>
    %48 = arith.subf %46, %47 : vector<1x128xf32>
    %cst_13 = arith.constant 0.000000e+00 : f32
    %49 = vector.broadcast %cst_13 : f32 to vector<1x128xf32>
    %50 = arith.maximumf %48, %49 : vector<1x128xf32>
    %cst_14 = arith.constant 9.99999974E-6 : f32
    %51 = vector.broadcast %cst_14 : f32 to vector<1x128xf32>
    %52 = arith.addf %50, %51 : vector<1x128xf32>
    %53 = math.rsqrt %52 : vector<1x128xf32>
    %54 = arith.mulf %27, %53 : vector<1x128xf32>
    %55 = arith.mulf %45, %54 : vector<1x128xf32>
    %56 = arith.subf %28, %55 : vector<1x128xf32>
    %57 = vector.broadcast %54 : vector<1x128xf32> to vector<32x128xf32>
    %58 = arith.mulf %0, %57 : vector<32x128xf32>
    %59 = vector.broadcast %56 : vector<1x128xf32> to vector<32x128xf32>
    %60 = arith.addf %58, %59 : vector<32x128xf32>
    %cst_15 = arith.constant 0.000000e+00 : f32
    %61 = vector.broadcast %cst_15 : f32 to vector<32x128xf32>
    %62 = arith.maximumf %60, %61 : vector<32x128xf32>
    %c0_16 = arith.constant 0 : index
    %c0_17 = arith.constant 0 : index
    %c0_18 = arith.constant 0 : index
    %63 = vector.load %arg1[%c0_16, %c0_17, %c0_18] : memref<2x384x128xbf16, #tpu.memory_space<vmem>>, vector<1x384x128xbf16>
    %64 = vector.shape_cast %63 : vector<1x384x128xbf16> to vector<384x128xbf16>
    %c1_i32_19 = arith.constant 1 : i32
    %65 = tpu.dynamic_rotate %62 by %c1_i32_19 dim 0 : vector<32x128xf32>, i32 -> vector<32x128xf32>
    %66 = vector.broadcast %21 : vector<32x1xf32> to vector<32x128xf32>
    %67 = arith.mulf %65, %66 : vector<32x128xf32>
    %c31_i32 = arith.constant 31 : i32
    %68 = tpu.dynamic_rotate %62 by %c31_i32 dim 0 : vector<32x128xf32>, i32 -> vector<32x128xf32>
    %69 = vector.broadcast %25 : vector<32x1xf32> to vector<32x128xf32>
    %70 = arith.mulf %68, %69 : vector<32x128xf32>
    %71 = tpu.concatenate %67, %62, %70 in 1 : vector<32x128xf32>, vector<32x128xf32>, vector<32x128xf32> -> vector<32x384xf32>
    %72 = arith.truncf %71 : vector<32x384xf32> to vector<32x384xbf16>
    %cst_20 = arith.constant dense<0.000000e+00> : vector<32x128xf32>
    %73 = tpu.matmul %72, %64, %cst_20 {dimension_numbers = #tpu.dot_dimension_numbers<[1], [0], [0], [1], [0, 0, 1, 1], [], []>} : vector<32x384xbf16>, vector<384x128xbf16>, vector<32x128xf32> -> vector<32x128xf32>
    %c2 = arith.constant 2 : index
    %c0_21 = arith.constant 0 : index
    %74 = vector.load %arg3[%c2, %c0_21] : memref<4x128xf32, #tpu.memory_space<vmem>>, vector<1x128xf32>
    %c3 = arith.constant 3 : index
    %c0_22 = arith.constant 0 : index
    %75 = vector.load %arg3[%c3, %c0_22] : memref<4x128xf32, #tpu.memory_space<vmem>>, vector<1x128xf32>
    %cst_23 = arith.constant dense<0.000000e+00> : vector<128xf32>
    %76 = vector.multi_reduction <add>, %73, %cst_23 [0] : vector<32x128xf32> to vector<128xf32>
    %77 = vector.shape_cast %76 : vector<128xf32> to vector<1x128xf32>
    %78 = arith.mulf %73, %73 : vector<32x128xf32>
    %cst_24 = arith.constant dense<0.000000e+00> : vector<128xf32>
    %79 = vector.multi_reduction <add>, %78, %cst_24 [0] : vector<32x128xf32> to vector<128xf32>
    %80 = vector.shape_cast %79 : vector<128xf32> to vector<1x128xf32>
    %c0_i32_25 = arith.constant 0 : i32
    %81 = vector.broadcast %c0_i32_25 : i32 to vector<2x1xi32>
    %82 = arith.cmpi eq, %26, %81 : vector<2x1xi32>
    %83 = vector.shape_cast %77 : vector<1x128xf32> to vector<1x128xf32>
    %84 = vector.broadcast %83 : vector<1x128xf32> to vector<2x128xf32>
    %85 = vector.shape_cast %80 : vector<1x128xf32> to vector<1x128xf32>
    %86 = vector.broadcast %85 : vector<1x128xf32> to vector<2x128xf32>
    %87 = vector.shape_cast %82 : vector<2x1xi1> to vector<2x1xi1>
    %88 = vector.broadcast %87 : vector<2x1xi1> to vector<2x128xi1>
    %89 = arith.select %88, %84, %86 : vector<2x128xi1>, vector<2x128xf32>
    %c0_26 = arith.constant 0 : index
    %c0_27 = arith.constant 0 : index
    %90 = vector.load %arg2[%c0_26, %c0_27] : memref<128x128xf32, #tpu.memory_space<vmem>>, vector<128x128xf32>
    %cst_28 = arith.constant dense<0.000000e+00> : vector<2x128xf32>
    %91 = tpu.matmul %89, %90, %cst_28 {dimension_numbers = #tpu.dot_dimension_numbers<[1], [0], [0], [1], [0, 0, 1, 1], [], []>} : vector<2x128xf32>, vector<128x128xf32>, vector<2x128xf32> -> vector<2x128xf32>
    %92 = vector.extract_strided_slice %91 {offsets = [0, 0], sizes = [1, 128], strides = [1, 1]} : vector<2x128xf32> to vector<1x128xf32>
    %93 = vector.extract_strided_slice %91 {offsets = [1, 0], sizes = [1, 128], strides = [1, 1]} : vector<2x128xf32> to vector<1x128xf32>
    %94 = arith.mulf %92, %92 : vector<1x128xf32>
    %95 = arith.subf %93, %94 : vector<1x128xf32>
    %cst_29 = arith.constant 0.000000e+00 : f32
    %96 = vector.broadcast %cst_29 : f32 to vector<1x128xf32>
    %97 = arith.maximumf %95, %96 : vector<1x128xf32>
    %cst_30 = arith.constant 9.99999974E-6 : f32
    %98 = vector.broadcast %cst_30 : f32 to vector<1x128xf32>
    %99 = arith.addf %97, %98 : vector<1x128xf32>
    %100 = math.rsqrt %99 : vector<1x128xf32>
    %101 = arith.mulf %74, %100 : vector<1x128xf32>
    %102 = arith.mulf %92, %101 : vector<1x128xf32>
    %103 = arith.subf %75, %102 : vector<1x128xf32>
    %104 = vector.broadcast %101 : vector<1x128xf32> to vector<32x128xf32>
    %105 = arith.mulf %73, %104 : vector<32x128xf32>
    %106 = vector.broadcast %103 : vector<1x128xf32> to vector<32x128xf32>
    %107 = arith.addf %105, %106 : vector<32x128xf32>
    %cst_31 = arith.constant 0.000000e+00 : f32
    %108 = vector.broadcast %cst_31 : f32 to vector<32x128xf32>
    %109 = arith.maximumf %107, %108 : vector<32x128xf32>
    %c1_32 = arith.constant 1 : index
    %c0_33 = arith.constant 0 : index
    %c0_34 = arith.constant 0 : index
    %110 = vector.load %arg1[%c1_32, %c0_33, %c0_34] : memref<2x384x128xbf16, #tpu.memory_space<vmem>>, vector<1x384x128xbf16>
    %111 = vector.shape_cast %110 : vector<1x384x128xbf16> to vector<384x128xbf16>
    %c1_i32_35 = arith.constant 1 : i32
    %112 = tpu.dynamic_rotate %109 by %c1_i32_35 dim 0 : vector<32x128xf32>, i32 -> vector<32x128xf32>
    %113 = vector.broadcast %21 : vector<32x1xf32> to vector<32x128xf32>
    %114 = arith.mulf %112, %113 : vector<32x128xf32>
    %c31_i32_36 = arith.constant 31 : i32
    %115 = tpu.dynamic_rotate %109 by %c31_i32_36 dim 0 : vector<32x128xf32>, i32 -> vector<32x128xf32>
    %116 = vector.broadcast %25 : vector<32x1xf32> to vector<32x128xf32>
    %117 = arith.mulf %115, %116 : vector<32x128xf32>
    %118 = tpu.concatenate %114, %109, %117 in 1 : vector<32x128xf32>, vector<32x128xf32>, vector<32x128xf32> -> vector<32x384xf32>
    %119 = arith.truncf %118 : vector<32x384xf32> to vector<32x384xbf16>
    %cst_37 = arith.constant dense<0.000000e+00> : vector<32x128xf32>
    %120 = tpu.matmul %119, %111, %cst_37 {dimension_numbers = #tpu.dot_dimension_numbers<[1], [0], [0], [1], [0, 0, 1, 1], [], []>} : vector<32x384xbf16>, vector<384x128xbf16>, vector<32x128xf32> -> vector<32x128xf32>
    %121 = arith.addf %120, %0 : vector<32x128xf32>
    %c0_38 = arith.constant 0 : index
    %c0_39 = arith.constant 0 : index
    %122 = vector.load %arg4[%c0_38, %c0_39] : memref<32x128xf32, #tpu.memory_space<vmem>>, vector<32x128xf32>
    tpu.vector_store %arg4[%c0_38, %c0_39], %121 {strides = array<i32>} : memref<32x128xf32, #tpu.memory_space<vmem>>, vector<32x128xf32>,
    return
  }
}

</mosaic_0001>

<llo_original>
// kernel: tpu_custom_call.1
$region0: #{tpu_custom_call.1}
  #allocation0 [shape = 'u32[]', space=smem, size = 0x4, offset = 0x4, fixed_abs, tag = 'smem constant byte address 0x4 - core index']
  #allocation1 [shape = 'u32[72,128]{1,0:T(1,128)}', space=vmem, size = 0x9000, scoped, tag = 'internal scratch']
  %s0 = inlined_call_operand.hbm [shape: f32[32,128], index: 0, kind: input, shape index: {}]
  %s1 = inlined_call_operand.hbm [shape: bf16[2,384,128], index: 1, kind: input, shape index: {}]
  %s2 = inlined_call_operand.hbm [shape: f32[128,128], index: 2, kind: input, shape index: {}]
  %s3 = inlined_call_operand.hbm [shape: f32[4,128], index: 3, kind: input, shape index: {}]
  %s4 = inlined_call_operand.hbm [shape: f32[32,128], index: 4, kind: output, shape index: {}]
  %s5 = sld [smem:[#allocation0]]
  $region42: #{tpu_custom_call.1} parent=0
    _
  %s7 = ssub.s32 1, %s5
  %s8 = scalar_select 0, %s7, %s5
  $region1: #{tpu_custom_call.1} parent=0
    #allocation2 [shape = 'u8[16384]{0}', space=vmem, size = 0x4000, scoped, tag = 'input window, operand 0, single buffered']
    #allocation3 [shape = 's32[1]{0}', space=sflag, size = 0x4, scoped, tag = 'scoped memory for tpu_custom_call.1']
    #allocation4 [shape = 's32[1]{0}', space=sflag, size = 0x4, scoped, tag = 'scoped memory for tpu_custom_call.1']
    #allocation5 [shape = 'u8[196608]{0}', space=vmem, size = 0x30000, scoped, tag = 'input window, operand 1, single buffered']
    #allocation6 [shape = 's32[1]{0}', space=sflag, size = 0x4, scoped, tag = 'scoped memory for tpu_custom_call.1']
    #allocation7 [shape = 'u8[65536]{0}', space=vmem, size = 0x10000, scoped, tag = 'input window, operand 2, single buffered']
    #allocation8 [shape = 'u8[2048]{0}', space=vmem, size = 0x800, scoped, tag = 'input window, operand 3, single buffered']
    #allocation9 [shape = 's32[1]{0}', space=sflag, size = 0x4, scoped, tag = 'scoped memory for tpu_custom_call.1']
    #allocation10 [shape = 'u8[16384]{0}', space=vmem, size = 0x4000, scoped, tag = 'output window, operand 0, single buffered']
    %9 = vsyncpa [#allocation3], 0
    %10 = vsyncpa [#allocation6], 0
    %11 = vsyncpa [#allocation9], 0
    %12 = vsyncpa [#allocation4], 0
    // Predicated region
    $region2: #{tpu_custom_call.1} parent=1 // pred_check
      _
    $region3: #{tpu_custom_call.1} parent=1 // pred_check_branch
      %14 = sbr.rel (0) target = $region5
    $region4: #{tpu_custom_call.1} parent=1 // pred_region
      %16 = vsyncadd [#allocation3], 0
      %s17 = sshll.u32 %s0, 4
      %s18 = int_to_ptr.hbm [resolvable:$true] %s17
      %s19 = sshll.u32 [#allocation2], 4
      %s20 = int_to_ptr.vmem [resolvable:$true] %s19
      %25 = dma.hbm_to_vmem [thread:$0]  %s18, 512, %s20, [#allocation3], 128, 128, 8
    $region5: #{tpu_custom_call.1} parent=1 // pred_fallthru
      _
    // Predicated region
    $region6: #{tpu_custom_call.1} parent=1 // pred_check
      _
    $region7: #{tpu_custom_call.1} parent=1 // pred_check_branch
      %27 = sbr.rel (0) target = $region9
    $region8: #{tpu_custom_call.1} parent=1 // pred_region
      %29 = vsyncadd [#allocation6], 0
      %s30 = sshll.u32 %s1, 4
      %s31 = int_to_ptr.hbm [resolvable:$true] %s30
      %s32 = sshll.u32 [#allocation5], 4
      %s33 = int_to_ptr.vmem [resolvable:$true] %s32
      %38 = dma.hbm_to_vmem [thread:$0]  %s31, 6144, %s33, [#allocation6], 64, 64, 4
    $region9: #{tpu_custom_call.1} parent=1 // pred_fallthru
      _
    // Predicated region
    $region10: #{tpu_custom_call.1} parent=1 // pred_check
      _
    $region11: #{tpu_custom_call.1} parent=1 // pred_check_branch
      %40 = sbr.rel (0) target = $region13
    $region12: #{tpu_custom_call.1} parent=1 // pred_region
      %42 = vsyncadd [#allocation6], 0
      %s43 = sshll.u32 %s2, 4
      %s44 = int_to_ptr.hbm [resolvable:$true] %s43
      %s45 = sshll.u32 [#allocation7], 4
      %s46 = int_to_ptr.vmem [resolvable:$true] %s45
      %51 = dma.hbm_to_vmem [thread:$0]  %s44, 2048, %s46, [#allocation6], 128, 128, 8
    $region13: #{tpu_custom_call.1} parent=1 // pred_fallthru
      _
    // Predicated region
    $region14: #{tpu_custom_call.1} parent=1 // pred_check
      _
    $region15: #{tpu_custom_call.1} parent=1 // pred_check_branch
      %53 = sbr.rel (0) target = $region17
    $region16: #{tpu_custom_call.1} parent=1 // pred_region
      %55 = vsyncadd [#allocation9], 0
      %s57 = sshll.u32 %s3, 4
      %s58 = int_to_ptr.hbm [resolvable:$true] %s57
      %s59 = sshll.u32 [#allocation8], 4
      %s60 = int_to_ptr.vmem [resolvable:$true] %s59
      %62 = dma.hbm_to_vmem [thread:$0]  %s58, 64, %s60, [#allocation9]
    $region17: #{tpu_custom_call.1} parent=1 // pred_fallthru
      _
    // Predicated region
    $region18: #{tpu_custom_call.1} parent=1 // pred_check
      _
    $region19: #{tpu_custom_call.1} parent=1 // pred_check_branch
      %64 = sbr.rel (0) target = $region21
    $region20: #{tpu_custom_call.1} parent=1 // pred_region
      %66 = dma.done [#allocation3], 512
    $region21: #{tpu_custom_call.1} parent=1 // pred_fallthru
      _
    // Predicated region
    $region22: #{tpu_custom_call.1} parent=1 // pred_check
      _
    $region23: #{tpu_custom_call.1} parent=1 // pred_check_branch
      %68 = sbr.rel (0) target = $region25
    $region24: #{tpu_custom_call.1} parent=1 // pred_region
      %70 = dma.done [#allocation6], 6144
    $region25: #{tpu_custom_call.1} parent=1 // pred_fallthru
      _
    // Predicated region
    $region26: #{tpu_custom_call.1} parent=1 // pred_check
      _
    $region27: #{tpu_custom_call.1} parent=1 // pred_check_branch
      %72 = sbr.rel (0) target = $region29
    $region28: #{tpu_custom_call.1} parent=1 // pred_region
      %74 = dma.done [#allocation6], 2048
    $region29: #{tpu_custom_call.1} parent=1 // pred_fallthru
      _
    // Predicated region
    $region30: #{tpu_custom_call.1} parent=1 // pred_check
      _
    $region31: #{tpu_custom_call.1} parent=1 // pred_check_branch
      %76 = sbr.rel (0) target = $region33
    $region32: #{tpu_custom_call.1} parent=1 // pred_region
      %78 = dma.done [#allocation9], 64
    $region33: #{tpu_custom_call.1} parent=1 // pred_fallthru
      _
    %v79 = vld [vmem:[#allocation2] sm:$0xff]
    %v80 = vld [vmem:[#allocation2 + $0x8] sm:$0xff]
    %v81 = vld [vmem:[#allocation2 + $0x10] sm:$0xff]
    %v82 = vld [vmem:[#allocation2 + $0x18] sm:$0xff]
    %v83 = vlaneseq
    %v84 = vshrl.u32 %v83, 7
    %v85 = vadd.s32 %v84, 8
    %v86 = vadd.s32 %v84, 16
    %v87 = vadd.s32 %v84, 24
    %vm88 = vcmp.lt.s32.totalorder %v84, 0
    %v89 = vsub.s32 0, %v84
    %v90 = vsel %vm88, %v89, %v84
    %v91 = vshrl.u32 %v90, 4
    %v92 = vand.u32 %v90, 15
    %v93 = vsub.s32 0, %v92
    %v94 = vsel %vm88, %v93, %v92
    %vm95 = vcmp.lt.s32.totalorder %v85, 0
    %v96 = vsub.s32 0, %v85
    %v97 = vsel %vm95, %v96, %v85
    %v98 = vshrl.u32 %v97, 4
    %v99 = vand.u32 %v97, 15
    %v100 = vsub.s32 0, %v99
    %v101 = vsel %vm95, %v100, %v99
    %vm102 = vcmp.lt.s32.totalorder %v86, 0
    %v103 = vsub.s32 0, %v86
    %v104 = vsel %vm102, %v103, %v86
    %v105 = vshrl.u32 %v104, 4
    %v106 = vand.u32 %v104, 15
    %v107 = vsub.s32 0, %v106
    %v108 = vsel %vm102, %v107, %v106
    %vm109 = vcmp.lt.s32.totalorder %v87, 0
    %v110 = vsub.s32 0, %v87
    %v111 = vsel %vm109, %v110, %v87
    %v112 = vshrl.u32 %v111, 4
    %v113 = vand.u32 %v111, 15
    %v114 = vsub.s32 0, %v113
    %v115 = vsel %vm109, %v114, %v113
    %vm116 = vcmp.ne.s32.totalorder %v94, 0
    %vm117 = vcmp.ne.s32.totalorder %v101, 0
    %vm118 = vcmp.ne.s32.totalorder %v108, 0
    %vm119 = vcmp.ne.s32.totalorder %v115, 0
    %vm120 = vcmp.lt.s32.totalorder %v94, 0
    %vm121 = vcmp.lt.s32.totalorder %v101, 0
    %vm122 = vcmp.lt.s32.totalorder %v108, 0
    %vm123 = vcmp.lt.s32.totalorder %v115, 0
    %vm124 = vmand %vm120, %vm116
    %vm125 = vmand %vm121, %vm117
    %vm126 = vmand %vm122, %vm118
    %vm127 = vmand %vm123, %vm119
    %v128 = vadd.s32 %v94, 16
    %v129 = vadd.s32 %v101, 16
    %v130 = vadd.s32 %v108, 16
    %v131 = vadd.s32 %v115, 16
    %v132 = vsel %vm124, %v128, %v94
    %v133 = vsel %vm125, %v129, %v101
    %v134 = vsel %vm126, %v130, %v108
    %v135 = vsel %vm127, %v131, %v115
    %vm136 = vcmp.ge.s32.totalorder %v132, 1
    %vm137 = vcmp.ge.s32.totalorder %v133, 1
    %vm138 = vcmp.ge.s32.totalorder %v134, 1
    %vm139 = vcmp.ge.s32.totalorder %v135, 1
    %v140 = vsel %vm136, 1, 0
    %v141 = vsel %vm137, 1, 0
    %v142 = vsel %vm138, 1, 0
    %v143 = vsel %vm139, 1, 0
    %v144 = vcvt.s32.f32 %v140
    %v145 = vcvt.s32.f32 %v141
    %v146 = vcvt.s32.f32 %v142
    %v147 = vcvt.s32.f32 %v143
    %vm148 = vcmp.le.s32.totalorder %v132, 14
    %vm149 = vcmp.le.s32.totalorder %v133, 14
    %vm150 = vcmp.le.s32.totalorder %v134, 14
    %vm151 = vcmp.le.s32.totalorder %v135, 14
    %v152 = vsel %vm148, 1, 0
    %v153 = vsel %vm149, 1, 0
    %v154 = vsel %vm150, 1, 0
    %v155 = vsel %vm151, 1, 0
    %v156 = vcvt.s32.f32 %v152
    %v157 = vcvt.s32.f32 %v153
    %v158 = vcvt.s32.f32 %v154
    %v159 = vcvt.s32.f32 %v155
    %v160 = vld [vmem:[#allocation8] sm:$0x1]
    %v161 = vld [vmem:[#allocation8 + $0x1] sm:$0x1]
    %v162 = vadd.f32 %v79, %v80
    %v163 = vadd.f32 %v162, %v81
    %v164 = vadd.f32 %v163, %v82
    %v165 = vrot.slane %v164, 4
    %v166 = vadd.f32 %v164, %v165
    %v167 = vrot.slane %v166, 2
    %v168 = vadd.f32 %v166, %v167
    %v169 = vrot.slane %v168, 1
    %v170 = vadd.f32 %v168, %v169
    %v171 = vmul.f32 %v79, %v79
    %v172 = vmul.f32 %v80, %v80
    %v173 = vmul.f32 %v81, %v81
    %v174 = vmul.f32 %v82, %v82
    %v175 = vadd.f32 %v171, %v172
    %v176 = vadd.f32 %v175, %v173
    %v177 = vadd.f32 %v176, %v174
    %v178 = vrot.slane %v177, 4
    %v179 = vadd.f32 %v177, %v178
    %v180 = vrot.slane %v179, 2
    %v181 = vadd.f32 %v179, %v180
    %v182 = vrot.slane %v181, 1
    %v183 = vadd.f32 %v181, %v182
    %vm184 = vcmp.eq.s32.totalorder %v84, 0
    %v185 = vsel %vm184, 1, 0
    %vm186 = vcmp.eq.s32.totalorder %v185, 1
    %v187 = vsel %vm186, %v170, %v183
    %v188 = vld [vmem:[#allocation7] sm:$0xff]
    %v189 = vld [vmem:[#allocation7 + $0x8] sm:$0xff]
    %v190 = vld [vmem:[#allocation7 + $0x10] sm:$0xff]
    %v191 = vld [vmem:[#allocation7 + $0x18] sm:$0xff]
    %v192 = vld [vmem:[#allocation7 + $0x20] sm:$0xff]
    %v193 = vld [vmem:[#allocation7 + $0x28] sm:$0xff]
    %v194 = vld [vmem:[#allocation7 + $0x30] sm:$0xff]
    %v195 = vld [vmem:[#allocation7 + $0x38] sm:$0xff]
    %v196 = vld [vmem:[#allocation7 + $0x40] sm:$0xff]
    %v197 = vld [vmem:[#allocation7 + $0x48] sm:$0xff]
    %v198 = vld [vmem:[#allocation7 + $0x50] sm:$0xff]
    %v199 = vld [vmem:[#allocation7 + $0x58] sm:$0xff]
    %v200 = vld [vmem:[#allocation7 + $0x60] sm:$0xff]
    %v201 = vld [vmem:[#allocation7 + $0x68] sm:$0xff]
    %v202 = vld [vmem:[#allocation7 + $0x70] sm:$0xff]
    %v203 = vld [vmem:[#allocation7 + $0x78] sm:$0xff]
    %204 = vmatpush.msra.mxu0 %v203
    %205 = vmatpush.msra.mxu0 %v202
    %206 = vmatpush.msra.mxu0 %v201
    %207 = vmatpush.msra.mxu0 %v200
    %208 = vmatpush.msra.mxu0 %v199
    %209 = vmatpush.msra.mxu0 %v198
    %210 = vmatpush.msra.mxu0 %v197
    %211 = vmatpush.msra.mxu0 %v196
    %212 = vmatpush.msra.mxu0 %v195
    %213 = vmatpush.msra.mxu0 %v194
    %214 = vmatpush.msra.mxu0 %v193
    %215 = vmatpush.msra.mxu0 %v192
    %216 = vmatpush.msra.mxu0 %v191
    %217 = vmatpush.msra.mxu0 %v190
    %218 = vmatpush.msra.mxu0 %v189
    %219 = vmatpush.msra.mxu0 %v188
    %220 = vmatmul.f32.gmra.mxu0 %v187
    %v221 = vpop.f32.mrf.mxu0
    %v222 = vadd.f32 0.0, %v221
    %223 = vdwg.mxu0
    %v224 = vmul.f32 %v222, %v222
    %v226 = vrot.slane %v224, 7
    %v228 = vsub.f32 %v222, %v226
    %v229 = vmax.f32 %v228, 0.0
    %v230 = vadd.f32 %v229, 1e-05
    %v231 = vrsqrt.pop %v230
    %v232 = vmul.f32 %v231, %v230
    %v233 = vmul.f32 %v232, %v231
    %v234 = vmul.f32 0.5, %v233
    %v235 = vsub.f32 1.5, %v234
    %v236 = vmul.f32 %v231, %v235
    %vm237 = vweird.f32 %v230
    %vm238 = vweird.f32 %v231
    %vm239 = vmor %vm237, %vm238
    %v240 = vsel %vm239, %v231, %v236
    %v242 = vrot.slane %v240, 1
    %v244 = vmul.f32 %v160, %v242
    %v245 = vmul.f32 %v222, %v244
    %v246 = vsub.f32 %v161, %v245
    %v247 = vperm.slane %v244, 0
    %v248 = vmul.f32 %v79, %v247
    %v249 = vmul.f32 %v80, %v247
    %v250 = vmul.f32 %v81, %v247
    %v251 = vmul.f32 %v82, %v247
    %v252 = vperm.slane %v246, 0
    %v253 = vadd.f32 %v248, %v252
    %v254 = vadd.f32 %v249, %v252
    %v255 = vadd.f32 %v250, %v252
    %v256 = vadd.f32 %v251, %v252
    %v257 = vmax.f32 %v253, 0.0
    %v258 = vmax.f32 %v254, 0.0
    %v259 = vmax.f32 %v255, 0.0
    %v260 = vmax.f32 %v256, 0.0
    %v261 = vld [vmem:[#allocation5] sm:$0xf]
    %v262 = vld [vmem:[#allocation5 + $0x4] sm:$0xf]
    %v263 = vld [vmem:[#allocation5 + $0x8] sm:$0xf]
    %v264 = vld [vmem:[#allocation5 + $0xc] sm:$0xf]
    %v265 = vld [vmem:[#allocation5 + $0x10] sm:$0xf]
    %v266 = vld [vmem:[#allocation5 + $0x14] sm:$0xf]
    %v267 = vld [vmem:[#allocation5 + $0x18] sm:$0xf]
    %v268 = vld [vmem:[#allocation5 + $0x1c] sm:$0xf]
    %v269 = vld [vmem:[#allocation5 + $0x20] sm:$0xf]
    %v270 = vld [vmem:[#allocation5 + $0x24] sm:$0xf]
    %v271 = vld [vmem:[#allocation5 + $0x28] sm:$0xf]
    %v272 = vld [vmem:[#allocation5 + $0x2c] sm:$0xf]
    %v273 = vld [vmem:[#allocation5 + $0x30] sm:$0xf]
    %v274 = vld [vmem:[#allocation5 + $0x34] sm:$0xf]
    %v275 = vld [vmem:[#allocation5 + $0x38] sm:$0xf]
    %v276 = vld [vmem:[#allocation5 + $0x3c] sm:$0xf]
    %v277 = vld [vmem:[#allocation5 + $0x40] sm:$0xf]
    %v278 = vld [vmem:[#allocation5 + $0x44] sm:$0xf]
    %v279 = vld [vmem:[#allocation5 + $0x48] sm:$0xf]
    %v280 = vld [vmem:[#allocation5 + $0x4c] sm:$0xf]
    %v281 = vld [vmem:[#allocation5 + $0x50] sm:$0xf]
    %v282 = vld [vmem:[#allocation5 + $0x54] sm:$0xf]
    %v283 = vld [vmem:[#allocation5 + $0x58] sm:$0xf]
    %v284 = vld [vmem:[#allocation5 + $0x5c] sm:$0xf]
    %v285 = vld [vmem:[#allocation5 + $0x60] sm:$0xf]
    %v286 = vld [vmem:[#allocation5 + $0x64] sm:$0xf]
    %v287 = vld [vmem:[#allocation5 + $0x68] sm:$0xf]
    %v288 = vld [vmem:[#allocation5 + $0x6c] sm:$0xf]
    %v289 = vld [vmem:[#allocation5 + $0x70] sm:$0xf]
    %v290 = vld [vmem:[#allocation5 + $0x74] sm:$0xf]
    %v291 = vld [vmem:[#allocation5 + $0x78] sm:$0xf]
    %v292 = vld [vmem:[#allocation5 + $0x7c] sm:$0xf]
    %v293 = vld [vmem:[#allocation5 + $0x80] sm:$0xf]
    %v294 = vld [vmem:[#allocation5 + $0x84] sm:$0xf]
    %v295 = vld [vmem:[#allocation5 + $0x88] sm:$0xf]
    %v296 = vld [vmem:[#allocation5 + $0x8c] sm:$0xf]
    %v297 = vld [vmem:[#allocation5 + $0x90] sm:$0xf]
    %v298 = vld [vmem:[#allocation5 + $0x94] sm:$0xf]
    %v299 = vld [vmem:[#allocation5 + $0x98] sm:$0xf]
    %v300 = vld [vmem:[#allocation5 + $0x9c] sm:$0xf]
    %v301 = vld [vmem:[#allocation5 + $0xa0] sm:$0xf]
    %v302 = vld [vmem:[#allocation5 + $0xa4] sm:$0xf]
    %v303 = vld [vmem:[#allocation5 + $0xa8] sm:$0xf]
    %v304 = vld [vmem:[#allocation5 + $0xac] sm:$0xf]
    %v305 = vld [vmem:[#allocation5 + $0xb0] sm:$0xf]
    %v306 = vld [vmem:[#allocation5 + $0xb4] sm:$0xf]
    %v307 = vld [vmem:[#allocation5 + $0xb8] sm:$0xf]
    %v308 = vld [vmem:[#allocation5 + $0xbc] sm:$0xf]
    %v309 = vrot.slane %v257, 7
    %v310 = vrot.slane %v258, 7
    %v311 = vrot.slane %v259, 7
    %v312 = vrot.slane %v260, 7
    %vm313 = vcmp.lt.s32.totalorder %v84, 1
    %v314 = vsel %vm313, %v311, %v312
    %v315 = vsel %vm313, %v310, %v311
    %v316 = vsel %vm313, %v309, %v310
    %v317 = vsel %vm313, %v312, %v309
    %v318 = vmul.f32 %v317, %v144
    %v319 = vmul.f32 %v316, %v145
    %v320 = vmul.f32 %v315, %v146
    %v321 = vmul.f32 %v314, %v147
    %v322 = vrot.slane %v257, 1
    %v323 = vrot.slane %v258, 1
    %v324 = vrot.slane %v259, 1
    %v325 = vrot.slane %v260, 1
    %vm326 = vcmp.lt.s32.totalorder %v84, 7
    %v327 = vsel %vm326, %v324, %v325
    %v328 = vsel %vm326, %v323, %v324
    %v329 = vsel %vm326, %v322, %v323
    %v330 = vsel %vm326, %v325, %v322
    %v331 = vmul.f32 %v329, %v156
    %v332 = vmul.f32 %v328, %v157
    %v333 = vmul.f32 %v327, %v158
    %v334 = vmul.f32 %v330, %v159
    %v335 = vpack.c.bf16 %v319, %v318
    %v336 = vpack.c.bf16 %v258, %v257
    %v337 = vpack.c.bf16 %v332, %v331
    %v338 = vpack.c.bf16 %v321, %v320
    %v339 = vpack.c.bf16 %v260, %v259
    %v340 = vpack.c.bf16 %v334, %v333
    %v389 = vunpack.c.l.b16 %v261
    %v390 = vunpack.c.l.b16 %v262
    %v391 = vunpack.c.l.b16 %v263
    %v392 = vunpack.c.l.b16 %v264
    %v393 = vunpack.c.l.b16 %v265
    %v394 = vunpack.c.l.b16 %v266
    %v395 = vunpack.c.l.b16 %v267
    %v396 = vunpack.c.l.b16 %v268
    %v397 = vunpack.c.l.b16 %v269
    %v398 = vunpack.c.l.b16 %v270
    %v399 = vunpack.c.l.b16 %v271
    %v400 = vunpack.c.l.b16 %v272
    %v401 = vunpack.c.l.b16 %v273
    %v402 = vunpack.c.l.b16 %v274
    %v403 = vunpack.c.l.b16 %v275
    %v404 = vunpack.c.l.b16 %v276
    %v405 = vunpack.c.l.b16 %v277
    %v406 = vunpack.c.l.b16 %v278
    %v407 = vunpack.c.l.b16 %v279
    %v408 = vunpack.c.l.b16 %v280
    %v409 = vunpack.c.l.b16 %v281
    %v410 = vunpack.c.l.b16 %v282
    %v411 = vunpack.c.l.b16 %v283
    %v412 = vunpack.c.l.b16 %v284
    %v413 = vunpack.c.l.b16 %v285
    %v414 = vunpack.c.l.b16 %v286
    %v415 = vunpack.c.l.b16 %v287
    %v416 = vunpack.c.l.b16 %v288
    %v417 = vunpack.c.l.b16 %v289
    %v418 = vunpack.c.l.b16 %v290
    %v419 = vunpack.c.l.b16 %v291
    %v420 = vunpack.c.l.b16 %v292
    %v421 = vunpack.c.l.b16 %v293
    %v422 = vunpack.c.l.b16 %v294
    %v423 = vunpack.c.l.b16 %v295
    %v424 = vunpack.c.l.b16 %v296
    %v425 = vunpack.c.l.b16 %v297
    %v426 = vunpack.c.l.b16 %v298
    %v427 = vunpack.c.l.b16 %v299
    %v428 = vunpack.c.l.b16 %v300
    %v429 = vunpack.c.l.b16 %v301
    %v430 = vunpack.c.l.b16 %v302
    %v431 = vunpack.c.l.b16 %v303
    %v432 = vunpack.c.l.b16 %v304
    %v433 = vunpack.c.l.b16 %v305
    %v434 = vunpack.c.l.b16 %v306
    %v435 = vunpack.c.l.b16 %v307
    %v436 = vunpack.c.l.b16 %v308
    %v437 = vpack.c.b16 %v390, %v389
    %v438 = vpack.c.b16 %v392, %v391
    %v439 = vpack.c.b16 %v394, %v393
    %v440 = vpack.c.b16 %v396, %v395
    %v441 = vpack.c.b16 %v398, %v397
    %v442 = vpack.c.b16 %v400, %v399
    %v443 = vpack.c.b16 %v402, %v401
    %v444 = vpack.c.b16 %v404, %v403
    %v445 = vpack.c.b16 %v406, %v405
    %v446 = vpack.c.b16 %v408, %v407
    %v447 = vpack.c.b16 %v410, %v409
    %v448 = vpack.c.b16 %v412, %v411
    %v449 = vpack.c.b16 %v414, %v413
    %v450 = vpack.c.b16 %v416, %v415
    %v451 = vpack.c.b16 %v418, %v417
    %v452 = vpack.c.b16 %v420, %v419
    %v453 = vpack.c.b16 %v422, %v421
    %v454 = vpack.c.b16 %v424, %v423
    %v455 = vpack.c.b16 %v426, %v425
    %v456 = vpack.c.b16 %v428, %v427
    %v457 = vpack.c.b16 %v430, %v429
    %v458 = vpack.c.b16 %v432, %v431
    %v459 = vpack.c.b16 %v434, %v433
    %v460 = vpack.c.b16 %v436, %v435
    %485 = vmatpush.bf16.msra.mxu0 %v444
    %486 = vmatpush.bf16.msra.mxu0 %v443
    %487 = vmatpush.bf16.msra.mxu0 %v442
    %488 = vmatpush.bf16.msra.mxu0 %v441
    %489 = vmatpush.bf16.msra.mxu0 %v440
    %490 = vmatpush.bf16.msra.mxu0 %v439
    %491 = vmatpush.bf16.msra.mxu0 %v438
    %492 = vmatpush.bf16.msra.mxu0 %v437
    %493 = vmatmul.bf16.gmra.mxu0 %v335
    %v494 = vpop.f32.mrf.mxu0
    %v495 = vadd.f32 0.0, %v494
    %v496 = vpop.f32.mrf.mxu0
    %v497 = vadd.f32 0.0, %v496
    %498 = vmatmul.bf16.gmra.mxu0 %v338
    %v499 = vpop.f32.mrf.mxu0
    %v500 = vadd.f32 0.0, %v499
    %v501 = vpop.f32.mrf.mxu0
    %v502 = vadd.f32 0.0, %v501
    %503 = vdwg.mxu0
    %504 = vmatpush.bf16.msra.mxu0 %v452
    %505 = vmatpush.bf16.msra.mxu0 %v451
    %506 = vmatpush.bf16.msra.mxu0 %v450
    %507 = vmatpush.bf16.msra.mxu0 %v449
    %508 = vmatpush.bf16.msra.mxu0 %v448
    %509 = vmatpush.bf16.msra.mxu0 %v447
    %510 = vmatpush.bf16.msra.mxu0 %v446
    %511 = vmatpush.bf16.msra.mxu0 %v445
    %512 = vmatmul.bf16.gmra.mxu0 %v336
    %v513 = vpop.f32.mrf.mxu0
    %v514 = vadd.f32 %v495, %v513
    %v515 = vpop.f32.mrf.mxu0
    %v516 = vadd.f32 %v497, %v515
    %517 = vmatmul.bf16.gmra.mxu0 %v339
    %v518 = vpop.f32.mrf.mxu0
    %v519 = vadd.f32 %v500, %v518
    %v520 = vpop.f32.mrf.mxu0
    %v521 = vadd.f32 %v502, %v520
    %522 = vdwg.mxu0
    %523 = vmatpush.bf16.msra.mxu0 %v460
    %524 = vmatpush.bf16.msra.mxu0 %v459
    %525 = vmatpush.bf16.msra.mxu0 %v458
    %526 = vmatpush.bf16.msra.mxu0 %v457
    %527 = vmatpush.bf16.msra.mxu0 %v456
    %528 = vmatpush.bf16.msra.mxu0 %v455
    %529 = vmatpush.bf16.msra.mxu0 %v454
    %530 = vmatpush.bf16.msra.mxu0 %v453
    %531 = vmatmul.bf16.gmra.mxu0 %v337
    %v532 = vpop.f32.mrf.mxu0
    %v533 = vadd.f32 %v514, %v532
    %v534 = vpop.f32.mrf.mxu0
    %v535 = vadd.f32 %v516, %v534
    %536 = vmatmul.bf16.gmra.mxu0 %v340
    %v537 = vpop.f32.mrf.mxu0
    %v538 = vadd.f32 %v519, %v537
    %v539 = vpop.f32.mrf.mxu0
    %v540 = vadd.f32 %v521, %v539
    %541 = vdwg.mxu0
    %v542 = vld [vmem:[#allocation8 + $0x2] sm:$0x1]
    %v543 = vld [vmem:[#allocation8 + $0x3] sm:$0x1]
    %v544 = vadd.f32 %v533, %v535
    %v545 = vadd.f32 %v544, %v538
    %v546 = vadd.f32 %v545, %v540
    %v547 = vrot.slane %v546, 4
    %v548 = vadd.f32 %v546, %v547
    %v549 = vrot.slane %v548, 2
    %v550 = vadd.f32 %v548, %v549
    %v551 = vrot.slane %v550, 1
    %v552 = vadd.f32 %v550, %v551
    %v553 = vmul.f32 %v533, %v533
    %v554 = vmul.f32 %v535, %v535
    %v555 = vmul.f32 %v538, %v538
    %v556 = vmul.f32 %v540, %v540
    %v557 = vadd.f32 %v553, %v554
    %v558 = vadd.f32 %v557, %v555
    %v559 = vadd.f32 %v558, %v556
    %v560 = vrot.slane %v559, 4
    %v561 = vadd.f32 %v559, %v560
    %v562 = vrot.slane %v561, 2
    %v563 = vadd.f32 %v561, %v562
    %v564 = vrot.slane %v563, 1
    %v565 = vadd.f32 %v563, %v564
    %v566 = vsel %vm186, %v552, %v565
    %567 = vmatpush.msra.mxu0 %v203
    %568 = vmatpush.msra.mxu0 %v202
    %569 = vmatpush.msra.mxu0 %v201
    %570 = vmatpush.msra.mxu0 %v200
    %571 = vmatpush.msra.mxu0 %v199
    %572 = vmatpush.msra.mxu0 %v198
    %573 = vmatpush.msra.mxu0 %v197
    %574 = vmatpush.msra.mxu0 %v196
    %575 = vmatpush.msra.mxu0 %v195
    %576 = vmatpush.msra.mxu0 %v194
    %577 = vmatpush.msra.mxu0 %v193
    %578 = vmatpush.msra.mxu0 %v192
    %579 = vmatpush.msra.mxu0 %v191
    %580 = vmatpush.msra.mxu0 %v190
    %581 = vmatpush.msra.mxu0 %v189
    %582 = vmatpush.msra.mxu0 %v188
    %583 = vmatmul.f32.gmra.mxu0 %v566
    %v584 = vpop.f32.mrf.mxu0
    %v585 = vadd.f32 0.0, %v584
    %586 = vdwg.mxu0
    %v587 = vmul.f32 %v585, %v585
    %v589 = vrot.slane %v587, 7
    %v591 = vsub.f32 %v585, %v589
    %v592 = vmax.f32 %v591, 0.0
    %v593 = vadd.f32 %v592, 1e-05
    %v594 = vrsqrt.pop %v593
    %v595 = vmul.f32 %v594, %v593
    %v596 = vmul.f32 %v595, %v594
    %v597 = vmul.f32 0.5, %v596
    %v598 = vsub.f32 1.5, %v597
    %v599 = vmul.f32 %v594, %v598
    %vm600 = vweird.f32 %v593
    %vm601 = vweird.f32 %v594
    %vm602 = vmor %vm600, %vm601
    %v603 = vsel %vm602, %v594, %v599
    %v605 = vrot.slane %v603, 1
    %v607 = vmul.f32 %v542, %v605
    %v608 = vmul.f32 %v585, %v607
    %v609 = vsub.f32 %v543, %v608
    %v610 = vperm.slane %v607, 0
    %v611 = vmul.f32 %v533, %v610
    %v612 = vmul.f32 %v535, %v610
    %v613 = vmul.f32 %v538, %v610
    %v614 = vmul.f32 %v540, %v610
    %v615 = vperm.slane %v609, 0
    %v616 = vadd.f32 %v611, %v615
    %v617 = vadd.f32 %v612, %v615
    %v618 = vadd.f32 %v613, %v615
    %v619 = vadd.f32 %v614, %v615
    %v620 = vmax.f32 %v616, 0.0
    %v621 = vmax.f32 %v617, 0.0
    %v622 = vmax.f32 %v618, 0.0
    %v623 = vmax.f32 %v619, 0.0
    %s624 = scalar_lea.vmem [#allocation5], 192
    %v625 = vld [vmem:[%s624] sm:$0xf]
    %v626 = vld [vmem:[%s624 + $0x4] sm:$0xf]
    %v627 = vld [vmem:[%s624 + $0x8] sm:$0xf]
    %v628 = vld [vmem:[%s624 + $0xc] sm:$0xf]
    %v629 = vld [vmem:[%s624 + $0x10] sm:$0xf]
    %v630 = vld [vmem:[%s624 + $0x14] sm:$0xf]
    %v631 = vld [vmem:[%s624 + $0x18] sm:$0xf]
    %v632 = vld [vmem:[%s624 + $0x1c] sm:$0xf]
    %v633 = vld [vmem:[%s624 + $0x20] sm:$0xf]
    %v634 = vld [vmem:[%s624 + $0x24] sm:$0xf]
    %v635 = vld [vmem:[%s624 + $0x28] sm:$0xf]
    %v636 = vld [vmem:[%s624 + $0x2c] sm:$0xf]
    %v637 = vld [vmem:[%s624 + $0x30] sm:$0xf]
    %v638 = vld [vmem:[%s624 + $0x34] sm:$0xf]
    %v639 = vld [vmem:[%s624 + $0x38] sm:$0xf]
    %v640 = vld [vmem:[%s624 + $0x3c] sm:$0xf]
    %v641 = vld [vmem:[%s624 + $0x40] sm:$0xf]
    %v642 = vld [vmem:[%s624 + $0x44] sm:$0xf]
    %v643 = vld [vmem:[%s624 + $0x48] sm:$0xf]
    %v644 = vld [vmem:[%s624 + $0x4c] sm:$0xf]
    %v645 = vld [vmem:[%s624 + $0x50] sm:$0xf]
    %v646 = vld [vmem:[%s624 + $0x54] sm:$0xf]
    %v647 = vld [vmem:[%s624 + $0x58] sm:$0xf]
    %v648 = vld [vmem:[%s624 + $0x5c] sm:$0xf]
    %v649 = vld [vmem:[%s624 + $0x60] sm:$0xf]
    %v650 = vld [vmem:[%s624 + $0x64] sm:$0xf]
    %v651 = vld [vmem:[%s624 + $0x68] sm:$0xf]
    %v652 = vld [vmem:[%s624 + $0x6c] sm:$0xf]
    %v653 = vld [vmem:[%s624 + $0x70] sm:$0xf]
    %v654 = vld [vmem:[%s624 + $0x74] sm:$0xf]
    %v655 = vld [vmem:[%s624 + $0x78] sm:$0xf]
    %v656 = vld [vmem:[%s624 + $0x7c] sm:$0xf]
    %v657 = vld [vmem:[%s624 + $0x80] sm:$0xf]
    %v658 = vld [vmem:[%s624 + $0x84] sm:$0xf]
    %v659 = vld [vmem:[%s624 + $0x88] sm:$0xf]
    %v660 = vld [vmem:[%s624 + $0x8c] sm:$0xf]
    %v661 = vld [vmem:[%s624 + $0x90] sm:$0xf]
    %v662 = vld [vmem:[%s624 + $0x94] sm:$0xf]
    %v663 = vld [vmem:[%s624 + $0x98] sm:$0xf]
    %v664 = vld [vmem:[%s624 + $0x9c] sm:$0xf]
    %v665 = vld [vmem:[%s624 + $0xa0] sm:$0xf]
    %v666 = vld [vmem:[%s624 + $0xa4] sm:$0xf]
    %v667 = vld [vmem:[%s624 + $0xa8] sm:$0xf]
    %v668 = vld [vmem:[%s624 + $0xac] sm:$0xf]
    %v669 = vld [vmem:[%s624 + $0xb0] sm:$0xf]
    %v670 = vld [vmem:[%s624 + $0xb4] sm:$0xf]
    %v671 = vld [vmem:[%s624 + $0xb8] sm:$0xf]
    %v672 = vld [vmem:[%s624 + $0xbc] sm:$0xf]
    %v673 = vrot.slane %v620, 7
    %v674 = vrot.slane %v621, 7
    %v675 = vrot.slane %v622, 7
    %v676 = vrot.slane %v623, 7
    %v677 = vsel %vm313, %v675, %v676
    %v678 = vsel %vm313, %v674, %v675
    %v679 = vsel %vm313, %v673, %v674
    %v680 = vsel %vm313, %v676, %v673
    %v681 = vmul.f32 %v680, %v144
    %v682 = vmul.f32 %v679, %v145
    %v683 = vmul.f32 %v678, %v146
    %v684 = vmul.f32 %v677, %v147
    %v685 = vrot.slane %v620, 1
    %v686 = vrot.slane %v621, 1
    %v687 = vrot.slane %v622, 1
    %v688 = vrot.slane %v623, 1
    %v689 = vsel %vm326, %v687, %v688
    %v690 = vsel %vm326, %v686, %v687
    %v691 = vsel %vm326, %v685, %v686
    %v692 = vsel %vm326, %v688, %v685
    %v693 = vmul.f32 %v691, %v156
    %v694 = vmul.f32 %v690, %v157
    %v695 = vmul.f32 %v689, %v158
    %v696 = vmul.f32 %v692, %v159
    %v697 = vpack.c.bf16 %v682, %v681
    %v698 = vpack.c.bf16 %v621, %v620
    %v699 = vpack.c.bf16 %v694, %v693
    %v700 = vpack.c.bf16 %v684, %v683
    %v701 = vpack.c.bf16 %v623, %v622
    %v702 = vpack.c.bf16 %v696, %v695
    %v751 = vunpack.c.l.b16 %v625
    %v752 = vunpack.c.l.b16 %v626
    %v753 = vunpack.c.l.b16 %v627
    %v754 = vunpack.c.l.b16 %v628
    %v755 = vunpack.c.l.b16 %v629
    %v756 = vunpack.c.l.b16 %v630
    %v757 = vunpack.c.l.b16 %v631
    %v758 = vunpack.c.l.b16 %v632
    %v759 = vunpack.c.l.b16 %v633
    %v760 = vunpack.c.l.b16 %v634
    %v761 = vunpack.c.l.b16 %v635
    %v762 = vunpack.c.l.b16 %v636
    %v763 = vunpack.c.l.b16 %v637
    %v764 = vunpack.c.l.b16 %v638
    %v765 = vunpack.c.l.b16 %v639
    %v766 = vunpack.c.l.b16 %v640
    %v767 = vunpack.c.l.b16 %v641
    %v768 = vunpack.c.l.b16 %v642
    %v769 = vunpack.c.l.b16 %v643
    %v770 = vunpack.c.l.b16 %v644
    %v771 = vunpack.c.l.b16 %v645
    %v772 = vunpack.c.l.b16 %v646
    %v773 = vunpack.c.l.b16 %v647
    %v774 = vunpack.c.l.b16 %v648
    %v775 = vunpack.c.l.b16 %v649
    %v776 = vunpack.c.l.b16 %v650
    %v777 = vunpack.c.l.b16 %v651
    %v778 = vunpack.c.l.b16 %v652
    %v779 = vunpack.c.l.b16 %v653
    %v780 = vunpack.c.l.b16 %v654
    %v781 = vunpack.c.l.b16 %v655
    %v782 = vunpack.c.l.b16 %v656
    %v783 = vunpack.c.l.b16 %v657
    %v784 = vunpack.c.l.b16 %v658
    %v785 = vunpack.c.l.b16 %v659
    %v786 = vunpack.c.l.b16 %v660
    %v787 = vunpack.c.l.b16 %v661
    %v788 = vunpack.c.l.b16 %v662
    %v789 = vunpack.c.l.b16 %v663
    %v790 = vunpack.c.l.b16 %v664
    %v791 = vunpack.c.l.b16 %v665
    %v792 = vunpack.c.l.b16 %v666
    %v793 = vunpack.c.l.b16 %v667
    %v794 = vunpack.c.l.b16 %v668
    %v795 = vunpack.c.l.b16 %v669
    %v796 = vunpack.c.l.b16 %v670
    %v797 = vunpack.c.l.b16 %v671
    %v798 = vunpack.c.l.b16 %v672
    %v799 = vpack.c.b16 %v752, %v751
    %v800 = vpack.c.b16 %v754, %v753
    %v801 = vpack.c.b16 %v756, %v755
    %v802 = vpack.c.b16 %v758, %v757
    %v803 = vpack.c.b16 %v760, %v759
    %v804 = vpack.c.b16 %v762, %v761
    %v805 = vpack.c.b16 %v764, %v763
    %v806 = vpack.c.b16 %v766, %v765
    %v807 = vpack.c.b16 %v768, %v767
    %v808 = vpack.c.b16 %v770, %v769
    %v809 = vpack.c.b16 %v772, %v771
    %v810 = vpack.c.b16 %v774, %v773
    %v811 = vpack.c.b16 %v776, %v775
    %v812 = vpack.c.b16 %v778, %v777
    %v813 = vpack.c.b16 %v780, %v779
    %v814 = vpack.c.b16 %v782, %v781
    %v815 = vpack.c.b16 %v784, %v783
    %v816 = vpack.c.b16 %v786, %v785
    %v817 = vpack.c.b16 %v788, %v787
    %v818 = vpack.c.b16 %v790, %v789
    %v819 = vpack.c.b16 %v792, %v791
    %v820 = vpack.c.b16 %v794, %v793
    %v821 = vpack.c.b16 %v796, %v795
    %v822 = vpack.c.b16 %v798, %v797
    %847 = vmatpush.bf16.msra.mxu0 %v806
    %848 = vmatpush.bf16.msra.mxu0 %v805
    %849 = vmatpush.bf16.msra.mxu0 %v804
    %850 = vmatpush.bf16.msra.mxu0 %v803
    %851 = vmatpush.bf16.msra.mxu0 %v802
    %852 = vmatpush.bf16.msra.mxu0 %v801
    %853 = vmatpush.bf16.msra.mxu0 %v800
    %854 = vmatpush.bf16.msra.mxu0 %v799
    %855 = vmatmul.bf16.gmra.mxu0 %v697
    %v856 = vpop.f32.mrf.mxu0
    %v857 = vadd.f32 %v79, %v856
    %v858 = vpop.f32.mrf.mxu0
    %v859 = vadd.f32 %v80, %v858
    %860 = vmatmul.bf16.gmra.mxu0 %v700
    %v861 = vpop.f32.mrf.mxu0
    %v862 = vadd.f32 %v81, %v861
    %v863 = vpop.f32.mrf.mxu0
    %v864 = vadd.f32 %v82, %v863
    %865 = vdwg.mxu0
    %866 = vmatpush.bf16.msra.mxu0 %v814
    %867 = vmatpush.bf16.msra.mxu0 %v813
    %868 = vmatpush.bf16.msra.mxu0 %v812
    %869 = vmatpush.bf16.msra.mxu0 %v811
    %870 = vmatpush.bf16.msra.mxu0 %v810
    %871 = vmatpush.bf16.msra.mxu0 %v809
    %872 = vmatpush.bf16.msra.mxu0 %v808
    %873 = vmatpush.bf16.msra.mxu0 %v807
    %874 = vmatmul.bf16.gmra.mxu0 %v698
    %v875 = vpop.f32.mrf.mxu0
    %v876 = vadd.f32 %v857, %v875
    %v877 = vpop.f32.mrf.mxu0
    %v878 = vadd.f32 %v859, %v877
    %879 = vmatmul.bf16.gmra.mxu0 %v701
    %v880 = vpop.f32.mrf.mxu0
    %v881 = vadd.f32 %v862, %v880
    %v882 = vpop.f32.mrf.mxu0
    %v883 = vadd.f32 %v864, %v882
    %884 = vdwg.mxu0
    %885 = vmatpush.bf16.msra.mxu0 %v822
    %886 = vmatpush.bf16.msra.mxu0 %v821
    %887 = vmatpush.bf16.msra.mxu0 %v820
    %888 = vmatpush.bf16.msra.mxu0 %v819
    %889 = vmatpush.bf16.msra.mxu0 %v818
    %890 = vmatpush.bf16.msra.mxu0 %v817
    %891 = vmatpush.bf16.msra.mxu0 %v816
    %892 = vmatpush.bf16.msra.mxu0 %v815
    %893 = vmatmul.bf16.gmra.mxu0 %v699
    %v894 = vpop.f32.mrf.mxu0
    %v895 = vadd.f32 %v876, %v894
    %v896 = vpop.f32.mrf.mxu0
    %v897 = vadd.f32 %v878, %v896
    %898 = vmatmul.bf16.gmra.mxu0 %v702
    %v899 = vpop.f32.mrf.mxu0
    %v900 = vadd.f32 %v881, %v899
    %v901 = vpop.f32.mrf.mxu0
    %v902 = vadd.f32 %v883, %v901
    %903 = vdwg.mxu0
    %904 = vst [vmem:[#allocation10] sm:$0xff] %v895
    %905 = vst [vmem:[#allocation10 + $0x8] sm:$0xff] %v897
    %906 = vst [vmem:[#allocation10 + $0x10] sm:$0xff] %v900
    %907 = vst [vmem:[#allocation10 + $0x18] sm:$0xff] %v902
    // Predicated region
    $region34: #{tpu_custom_call.1} parent=1 // pred_check
      _
    $region35: #{tpu_custom_call.1} parent=1 // pred_check_branch
      %909 = sbr.rel (0) target = $region37
    $region36: #{tpu_custom_call.1} parent=1 // pred_region
      %911 = vsyncadd [#allocation4], 0
      %s912 = sshll.u32 [#allocation10], 4
      %s913 = int_to_ptr.vmem [resolvable:$true] %s912
      %s914 = sshll.u32 %s4, 4
      %s915 = int_to_ptr.hbm [resolvable:$true] %s914
      %920 = dma.vmem_to_hbm [thread:$0]  %s913, 512, %s915, [#allocation4], 128, 128, 8
    $region37: #{tpu_custom_call.1} parent=1 // pred_fallthru
      _
    // Predicated region
    $region38: #{tpu_custom_call.1} parent=1 // pred_check
      _
    $region39: #{tpu_custom_call.1} parent=1 // pred_check_branch
      %922 = sbr.rel (0) target = $region41
    $region40: #{tpu_custom_call.1} parent=1 // pred_region
      %924 = dma.done [#allocation4], 512
    $region41: #{tpu_custom_call.1} parent=1 // pred_fallthru
      _
    %925 = vsyncpa [#allocation3], 1
    %926 = vsyncpa [#allocation6], 1
    %927 = vsyncpa [#allocation9], 1
    %928 = vsyncpa [#allocation4], 1

</llo_original>
